<compile_context>
chip_gen: v5e
topology: v5e:2x2
jax: 0.10.0
libtpu: 0.0.40
codegen_flags: <defaults>
</compile_context>

<pallas_src>
import functools

import jax
import jax.numpy as jnp
from jax.experimental import pallas as pl
from jax.experimental.pallas import tpu as pltpu

NEG_SLOPE = 0.01  # torch.nn.LeakyReLU() default negative_slope


def _leaky_relu(x):
    return jnp.where(x >= 0, x, NEG_SLOPE * x)


@functools.lru_cache(maxsize=None)
def _roll_is_numpy_convention():
    """Probe pltpu.roll once: True iff roll(x, s, ax)[i] == x[(i - s) % n]."""

    def probe_kernel(x_ref, o_ref):
        o_ref[...] = pltpu.roll(x_ref[...], 1, 1)

    x = jnp.arange(8 * 128, dtype=jnp.float32).reshape(8, 128)
    out = pl.pallas_call(
        probe_kernel,
        out_shape=jax.ShapeDtypeStruct((8, 128), jnp.float32),
    )(x)
    return bool(out[0, 1] == x[0, 0])


@functools.lru_cache(maxsize=None)
def _tap_shifts(H, W, n_lanes):
    """Static lane-roll amounts realizing shifted[q] = x[q + dh*W + dw]."""
    np_conv = _roll_is_numpy_convention()
    shifts = []
    for dh in (-1, 0, 1):
        for dw in (-1, 0, 1):
            off = dh * W + dw
            shifts.append(((-off) % n_lanes) if np_conv else (off % n_lanes))
    return tuple(shifts)  # tap order t = (dh+1)*3 + (dw+1) == kh*3 + kw


@functools.lru_cache(maxsize=None)
def _tap_masks(N, H, W):
    """(9, N*H*W) f32: 1 where tap (dh,dw) stays inside its image, else 0."""
    HW = H * W
    p = jnp.arange(N * HW, dtype=jnp.int32) % HW
    hh, ww = p // W, p % W
    rows = []
    for dh in (-1, 0, 1):
        for dw in (-1, 0, 1):
            valid = ((hh + dh >= 0) & (hh + dh < H)
                     & (ww + dw >= 0) & (ww + dw < W))
            rows.append(valid.astype(jnp.float32))
    return jnp.stack(rows)


def _repack_weight(w):
    """PyTorch (Cout, Cin, 3, 3) -> W_cat (Cout, 9*Cin); column = t*Cin + ci."""
    cout, cin = w.shape[0], w.shape[1]
    return jnp.transpose(w, (0, 2, 3, 1)).reshape(cout, 9 * cin)


def _skblock_kernel(x_ref, w1_ref, w2_ref, m_ref, o_ref, stk_ref, *, taps):
    """Fused out = lrelu(conv2(lrelu(conv1(x)))) + x on a (C, N*H*W) slab."""
    C, NHW = x_ref.shape
    x = x_ref[...].astype(jnp.float32)          # residual too; stays in vregs

    def conv3x3(v, w_ref):
        # Stage the 9 shifted+masked taps into a (9C, NHW) slab (rolls on the
        # XLU, masks on the VPU), then contract with W_cat in ONE MXU matmul.
        for t, shift in enumerate(taps):
            shifted = pltpu.roll(v, shift, 1) if shift else v
            stk_ref[t * C:(t + 1) * C, :] = shifted * m_ref[t:t + 1, :]
        return jnp.dot(w_ref[...], stk_ref[...],
                       preferred_element_type=jnp.float32)

    h = _leaky_relu(conv3x3(x, w1_ref))         # conv1 + relu1 (never hits HBM)
    h = _leaky_relu(conv3x3(h, w2_ref))         # conv2 + relu2
    o_ref[...] = (h + x).astype(o_ref.dtype)    # residual add, lane-dense store


def sk_block_forward(x_nchw, w1_torch, w2_torch, use_sk=False):
    """SKBlock.forward.

    x_nchw             : (N, C, H, W) float32
    w1_torch, w2_torch : (C, C, 3, 3) float32 (PyTorch conv weights, bias=False)
    """
    if use_sk:
        # TODO(synk): SKLayer / FRM were not defined in the provided source.
        raise NotImplementedError("use_sk=True path (SKLayer/FRM) not provided")

    N, C, H, W = x_nchw.shape
    HW = H * W
    NHW = N * HW

    # Channels-major, lane-dense layout (C, N*H*W): wrapper-side layout
    # plumbing so the kernel's minor axis is 512 (multiple of 128).
    x_flat = jnp.transpose(x_nchw.reshape(N, C, HW), (1, 0, 2)).reshape(C, NHW)
    w1 = _repack_weight(w1_torch)               # (C, 9C)
    w2 = _repack_weight(w2_torch)               # (C, 9C)
    masks = _tap_masks(N, H, W)                 # (9, NHW), cached per shape
    taps = _tap_shifts(H, W, NHW)               # 9 static roll amounts, cached

    kernel = functools.partial(_skblock_kernel, taps=taps)

    out_flat = pl.pallas_call(
        kernel,
        out_shape=jax.ShapeDtypeStruct((C, NHW), x_nchw.dtype),
        grid_spec=pltpu.PrefetchScalarGridSpec(
            num_scalar_prefetch=0,
            grid=(1,),                                        # whole batch per step
            in_specs=[
                pl.BlockSpec((C, NHW), lambda i: (0, 0)),     # activations
                pl.BlockSpec((C, 9 * C), lambda i: (0, 0)),   # conv1 W_cat
                pl.BlockSpec((C, 9 * C), lambda i: (0, 0)),   # conv2 W_cat
                pl.BlockSpec((9, NHW), lambda i: (0, 0)),     # boundary masks
            ],
            out_specs=pl.BlockSpec((C, NHW), lambda i: (0, 0)),
            scratch_shapes=[pltpu.VMEM((9 * C, NHW), jnp.float32)],  # tap slab
        ),
        compiler_params=pltpu.CompilerParams(
            dimension_semantics=("arbitrary",)),
    )(x_flat, w1, w2, masks)

    return jnp.transpose(out_flat.reshape(C, N, HW),
                         (1, 0, 2)).reshape(N, C, H, W)


def _reference_forward(x_nchw, w1_torch, w2_torch):
    """Pure-JAX reference (lax conv, f32 precision) for the correctness check."""
    dn = jax.lax.conv_dimension_numbers(x_nchw.shape, w1_torch.shape,
                                        ("NCHW", "OIHW", "NCHW"))

    def conv(x, w):
        return jax.lax.conv_general_dilated(
            x, w, (1, 1), ((1, 1), (1, 1)), dimension_numbers=dn,
            precision=jax.lax.Precision.HIGHEST)

    out = _leaky_relu(conv(x_nchw, w1_torch))
    out = _leaky_relu(conv(out, w2_torch))
    return out + x_nchw


if __name__ == "__main__":
    planes = 4
    N, H, W = 2, 16, 16

    key = jax.random.PRNGKey(0)
    kx, kw1, kw2 = jax.random.split(key, 3)

    x = jax.random.normal(kx, (N, planes, H, W), dtype=jnp.float32)
    # deterministic "kaiming-ish" init for the two 3x3 convs (bias=False)
    scale = (2.0 / (planes * 9)) ** 0.5
    w1 = jax.random.normal(kw1, (planes, planes, 3, 3), dtype=jnp.float32) * scale
    w2 = jax.random.normal(kw2, (planes, planes, 3, 3), dtype=jnp.float32) * scale

    out = sk_block_forward(x, w1, w2)
    out = jax.block_until_ready(out)

    ref = _reference_forward(x, w1, w2)
    assert out.shape == (N, planes, H, W)
    assert jnp.allclose(out, ref, atol=1e-3, rtol=1e-3), "mismatch vs reference"

    print("KERNEL_OK")
</pallas_src>

<mosaic_0001>
module attributes {stable_mosaic.version = 11 : i64} {
  func.func @probe_kernel(%arg0: memref<8x128xf32, #tpu.memory_space<vmem>>, %arg1: memref<8x128xf32, #tpu.memory_space<vmem>>) attributes {dimension_semantics = [], scalar_prefetch = 0 : i64, scratch_operands = 0 : i64, tpu.core_type = #tpu.core_type<tc>} {
    %c0 = arith.constant 0 : index
    %c0_0 = arith.constant 0 : index
    %0 = vector.load %arg0[%c0, %c0_0] : memref<8x128xf32, #tpu.memory_space<vmem>>, vector<8x128xf32>
    %c1_i32 = arith.constant 1 : i32
    %1 = tpu.dynamic_rotate %0 by %c1_i32 dim 1 : vector<8x128xf32>, i32 -> vector<8x128xf32>
    %c0_1 = arith.constant 0 : index
    %c0_2 = arith.constant 0 : index
    %2 = vector.load %arg1[%c0_1, %c0_2] : memref<8x128xf32, #tpu.memory_space<vmem>>, vector<8x128xf32>
    tpu.vector_store %arg1[%c0_1, %c0_2], %1 {strides = array<i32>} : memref<8x128xf32, #tpu.memory_space<vmem>>, vector<8x128xf32>,
    return
  }
}

</mosaic_0001>

<llo_original>
// kernel: tpu_custom_call.1
$region0: #{tpu_custom_call.1}
  #allocation0 [shape = 'u32[]', space=smem, size = 0x4, offset = 0x4, fixed_abs, tag = 'smem constant byte address 0x4 - core index']
  #allocation1 [shape = 'u32[72,128]{1,0:T(1,128)}', space=vmem, size = 0x9000, scoped, tag = 'internal scratch']
  %s0 = inlined_call_operand.hbm [shape: f32[8,128], index: 0, kind: input, shape index: {}]
  %s1 = inlined_call_operand.hbm [shape: f32[8,128], index: 1, kind: output, shape index: {}]
  %s2 = sld [smem:[#allocation0]]
  $region18: #{tpu_custom_call.1} parent=0
    _
  %s4 = ssub.s32 1, %s2
  %s5 = scalar_select 0, %s4, %s2
  $region1: #{tpu_custom_call.1} parent=0
    #allocation2 [shape = 'u8[4096]{0}', space=vmem, size = 0x1000, scoped, tag = 'input window, operand 0, single buffered']
    #allocation3 [shape = 's32[1]{0}', space=sflag, size = 0x4, scoped, tag = 'scoped memory for tpu_custom_call.1']
    #allocation4 [shape = 's32[1]{0}', space=sflag, size = 0x4, scoped, tag = 'scoped memory for tpu_custom_call.1']
    #allocation5 [shape = 'u8[4096]{0}', space=vmem, size = 0x1000, scoped, tag = 'output window, operand 0, single buffered']
    %6 = vsyncpa [#allocation3], 0
    %7 = vsyncpa [#allocation4], 0
    // Predicated region
    $region2: #{tpu_custom_call.1} parent=1 // pred_check
      _
    $region3: #{tpu_custom_call.1} parent=1 // pred_check_branch
      %9 = sbr.rel (0) target = $region5
    $region4: #{tpu_custom_call.1} parent=1 // pred_region
      %11 = vsyncadd [#allocation3], 0
      %s13 = sshll.u32 %s0, 4
      %s14 = int_to_ptr.hbm [resolvable:$true] %s13
      %s15 = sshll.u32 [#allocation2], 4
      %s16 = int_to_ptr.vmem [resolvable:$true] %s15
      %18 = dma.hbm_to_vmem [thread:$0]  %s14, 128, %s16, [#allocation3]
    $region5: #{tpu_custom_call.1} parent=1 // pred_fallthru
      _
    // Predicated region
    $region6: #{tpu_custom_call.1} parent=1 // pred_check
      _
    $region7: #{tpu_custom_call.1} parent=1 // pred_check_branch
      %20 = sbr.rel (0) target = $region9
    $region8: #{tpu_custom_call.1} parent=1 // pred_region
      %22 = dma.done [#allocation3], 128
    $region9: #{tpu_custom_call.1} parent=1 // pred_fallthru
      _
    %v23 = vld [vmem:[#allocation2] sm:$0xff]
    %24 = vrot.lane.b32.xlu0 %v23, 1
    %v25 = vpop.permute.xlu0 %24
    %26 = vst [vmem:[#allocation5] sm:$0xff] %v25
    // Predicated region
    $region10: #{tpu_custom_call.1} parent=1 // pred_check
      _
    $region11: #{tpu_custom_call.1} parent=1 // pred_check_branch
      %28 = sbr.rel (0) target = $region13
    $region12: #{tpu_custom_call.1} parent=1 // pred_region
      %30 = vsyncadd [#allocation4], 0
      %s32 = sshll.u32 [#allocation5], 4
      %s33 = int_to_ptr.vmem [resolvable:$true] %s32
      %s34 = sshll.u32 %s1, 4
      %s35 = int_to_ptr.hbm [resolvable:$true] %s34
      %37 = dma.vmem_to_hbm [thread:$0]  %s33, 128, %s35, [#allocation4]
    $region13: #{tpu_custom_call.1} parent=1 // pred_fallthru
      _
    // Predicated region
    $region14: #{tpu_custom_call.1} parent=1 // pred_check
      _
    $region15: #{tpu_custom_call.1} parent=1 // pred_check_branch
      %39 = sbr.rel (0) target = $region17
    $region16: #{tpu_custom_call.1} parent=1 // pred_region
      %41 = dma.done [#allocation4], 128
    $region17: #{tpu_custom_call.1} parent=1 // pred_fallthru
      _
    %42 = vsyncpa [#allocation3], 1
    %43 = vsyncpa [#allocation4], 1

</llo_original>
